<compile_context>
chip_gen: v5e
topology: v5e:2x2
jax: 0.10.0
libtpu: 0.0.40
codegen_flags: <defaults>
</compile_context>

<pallas_src>
import jax
import jax.numpy as jnp
from jax.experimental import pallas as pl
from jax.experimental.pallas import tpu as pltpu


# --------------------------------------------------------------------------------------
# Fused kernel: one batch element per grid step, NCL layout.
# --------------------------------------------------------------------------------------
def _h_operator_kernel(xr_ref, xi_ref, w1_ref, b1_ref, w2_ref, b2_ref, or_ref, oi_ref):
    """Fused conv1 -> ReLU -> conv2 for one batch element.

    xr_ref, xi_ref : (1, C, L)      real / imag input tile (f32, NCL)
    w1_ref, w2_ref : (2C, 3*2C)     stacked complex conv weights (MXU dtype)
    b1_ref, b2_ref : (2C, 1)        effective complex biases (f32): [br-bi ; br+bi]
    or_ref, oi_ref : (1, C, L)      real / imag outputs (f32, NCL)
    """
    C = xr_ref.shape[1]
    L = xr_ref.shape[2]

    # Stack real/imag along the channel (sublane) axis -> (2C, L) tile, L on lanes.
    x = jnp.concatenate([xr_ref[0], xi_ref[0]], axis=0)          # (2C, L) f32

    def taps(v):
        # im2col for ks=3, pad=1: row-block k at column l holds v[:, l + k - 1]
        # (zero outside [0, L)).  Built with two zero halo columns, no HBM pad.
        z = jnp.zeros((v.shape[0], 1), v.dtype)
        vp = jnp.concatenate([z, v, z], axis=1)                  # (2C, L+2)
        return jnp.concatenate(
            [vp[:, 0:L], vp[:, 1:L + 1], vp[:, 2:L + 2]], axis=0)  # (6C, L)

    def clayer(v, w_ref, b_ref):
        # One MXU matmul per layer: (2C, 6C) @ (6C, L), f32 accumulation.
        t = taps(v).astype(w_ref.dtype)
        y = jnp.dot(w_ref[...], t, preferred_element_type=jnp.float32)
        return y + b_ref[...]                                    # (2C, L) + (2C, 1)

    y1 = jnp.maximum(clayer(x, w1_ref, b1_ref), 0.0)             # layer-1 stays on chip
    y2 = clayer(y1, w2_ref, b2_ref)

    or_ref[0] = y2[:C, :]
    oi_ref[0] = y2[C:, :]


# --------------------------------------------------------------------------------------
# Parameter handling (PyTorch Conv1d layout: weight (Cout, Cin, K), bias (Cout,)).
# --------------------------------------------------------------------------------------
def init_h_operator_params(key, num_in=32, num_out=32, ks=3):
    """Deterministic synthetic parameters in PyTorch Conv1d layout."""
    keys = jax.random.split(key, 8)
    scale = 1.0 / jnp.sqrt(float(num_in * ks))

    def w(k, cout, cin):
        return (scale * jax.random.normal(k, (cout, cin, ks))).astype(jnp.float32)

    def b(k, cout):
        return (scale * jax.random.normal(k, (cout,))).astype(jnp.float32)

    return {
        "conv1": {"wr": w(keys[0], num_out, num_in), "wi": w(keys[1], num_out, num_in),
                  "br": b(keys[2], num_out), "bi": b(keys[3], num_out)},
        "conv2": {"wr": w(keys[4], num_out, num_out), "wi": w(keys[5], num_out, num_out),
                  "br": b(keys[6], num_out), "bi": b(keys[7], num_out)},
    }


def _stack_complex_conv(wr, wi, br, bi, mxu_dtype):
    """Fold one complex ks=3 conv into a (2Cout, 3*2Cin) matrix + (2Cout, 1) bias.

    With stacked input rows [xr ; xi], per-tap block is [[Wr, -Wi], [Wi, Wr]] so that
      y_real = Wr*xr - Wi*xi + (br - bi)
      y_imag = Wi*xr + Wr*xi + (br + bi)
    matching the PyTorch CConv algebra exactly.
    """
    Cout, Cin, K = wr.shape
    top = jnp.concatenate([wr, -wi], axis=1)        # (Cout, 2Cin, K) -> real output rows
    bot = jnp.concatenate([wi, wr], axis=1)         # (Cout, 2Cin, K) -> imag output rows
    blk = jnp.concatenate([top, bot], axis=0)       # (2Cout, 2Cin, K)
    w = jnp.transpose(blk, (0, 2, 1)).reshape(2 * Cout, K * 2 * Cin).astype(mxu_dtype)
    b = jnp.concatenate([br - bi, br + bi])[:, None].astype(jnp.float32)   # (2Cout, 1)
    return w, b


def prepare_h_operator_params(params, mxu_dtype=jnp.bfloat16):
    """Precompute stacked weights and effective biases (done once, outside the kernel)."""
    w1, b1 = _stack_complex_conv(**params["conv1"], mxu_dtype=mxu_dtype)
    w2, b2 = _stack_complex_conv(**params["conv2"], mxu_dtype=mxu_dtype)
    return {"w1": w1, "b1": b1, "w2": w2, "b2": b2}


# --------------------------------------------------------------------------------------
# Wrapper: single fused, gridded pallas_call.  Inputs/outputs in PyTorch NCL layout.
# --------------------------------------------------------------------------------------
def h_operator_forward(x_r, x_i, prep):
    N, C, L = x_r.shape
    x_r = x_r.astype(jnp.float32)
    x_i = x_i.astype(jnp.float32)
    w1, b1, w2, b2 = prep["w1"], prep["b1"], prep["w2"], prep["b2"]

    io_spec = pl.BlockSpec((1, C, L), lambda n: (n, 0, 0))
    # NOTE: for very long L, add a length grid axis with a halo of 1; at typical MRS
    # lengths a full (6C, L) im2col tile is only a few MiB of VMEM per batch element.

    return pl.pallas_call(
        _h_operator_kernel,
        out_shape=(jax.ShapeDtypeStruct((N, C, L), jnp.float32),
                   jax.ShapeDtypeStruct((N, C, L), jnp.float32)),
        grid=(N,),
        in_specs=[io_spec, io_spec,
                  pl.BlockSpec(w1.shape, lambda n: (0, 0)),
                  pl.BlockSpec(b1.shape, lambda n: (0, 0)),
                  pl.BlockSpec(w2.shape, lambda n: (0, 0)),
                  pl.BlockSpec(b2.shape, lambda n: (0, 0))],
        out_specs=(io_spec, io_spec),
        compiler_params=pltpu.CompilerParams(
            dimension_semantics=("parallel",),        # shard batches over v7x's 2 TCs
            vmem_limit_bytes=32 * 1024 * 1024),
    )(x_r, x_i, w1, b1, w2, b2)


# --------------------------------------------------------------------------------------
# Pure-JAX reference (correctness check only), in PyTorch NCL layout.
# --------------------------------------------------------------------------------------
def _conv1d_ref(x, w, b):
    N, Cin, L = x.shape
    K = w.shape[2]
    xp = jnp.pad(x, ((0, 0), (0, 0), (1, 1)))
    y = sum(jnp.einsum("ncl,oc->nol", xp[:, :, k:k + L], w[:, :, k]) for k in range(K))
    return y + b[None, :, None]


def _cconv_ref(xr, xi, p):
    x_rr = _conv1d_ref(xr, p["wr"], p["br"])
    x_ri = _conv1d_ref(xr, p["wi"], p["bi"])
    x_ir = _conv1d_ref(xi, p["wr"], p["br"])
    x_ii = _conv1d_ref(xi, p["wi"], p["bi"])
    return x_rr - x_ii, x_ri + x_ir


def h_operator_ref(x_r, x_i, params):
    yr, yi = _cconv_ref(x_r.astype(jnp.float32), x_i.astype(jnp.float32), params["conv1"])
    yr, yi = jax.nn.relu(yr), jax.nn.relu(yi)
    return _cconv_ref(yr, yi, params["conv2"])


if __name__ == "__main__":
    key = jax.random.PRNGKey(0)
    k_xr, k_xi, k_p = jax.random.split(key, 3)

    N, C, L = 2, 32, 16                     # NCL, matching Conv1d(32, 32, ks=3, pad=1)
    x_r = jax.random.normal(k_xr, (N, C, L), dtype=jnp.float32)
    x_i = jax.random.normal(k_xi, (N, C, L), dtype=jnp.float32)

    params = init_h_operator_params(k_p, num_in=C, num_out=C, ks=3)
    ref_r, ref_i = h_operator_ref(x_r, x_i, params)

    # f32-on-MXU path: tight correctness check.
    prep_f32 = prepare_h_operator_params(params, mxu_dtype=jnp.float32)
    out_r, out_i = jax.block_until_ready(h_operator_forward(x_r, x_i, prep_f32))
    assert out_r.shape == (N, C, L) and out_i.shape == (N, C, L)
    assert jnp.allclose(out_r, ref_r, atol=1e-3, rtol=1e-3)
    assert jnp.allclose(out_i, ref_i, atol=1e-3, rtol=1e-3)

    # bf16-on-MXU path (default for performance): looser tolerance as advised.
    prep_bf16 = prepare_h_operator_params(params, mxu_dtype=jnp.bfloat16)
    out_r16, out_i16 = jax.block_until_ready(h_operator_forward(x_r, x_i, prep_bf16))
    assert jnp.allclose(out_r16, ref_r, atol=5e-2, rtol=5e-2)
    assert jnp.allclose(out_i16, ref_i, atol=5e-2, rtol=5e-2)

    print("KERNEL_OK")
</pallas_src>

<mosaic_0001>
module attributes {stable_mosaic.version = 11 : i64} {
  func.func @_h_operator_kernel(%arg0: i32, %arg1: memref<1x32x16xf32, #tpu.memory_space<vmem>>, %arg2: memref<1x32x16xf32, #tpu.memory_space<vmem>>, %arg3: memref<64x192xf32, #tpu.memory_space<vmem>>, %arg4: memref<64x1xf32, #tpu.memory_space<vmem>>, %arg5: memref<64x192xf32, #tpu.memory_space<vmem>>, %arg6: memref<64x1xf32, #tpu.memory_space<vmem>>, %arg7: memref<1x32x16xf32, #tpu.memory_space<vmem>>, %arg8: memref<1x32x16xf32, #tpu.memory_space<vmem>>) attributes {dimension_semantics = [#tpu.dimension_semantics<parallel>], iteration_bounds = array<i64: 2>, scalar_prefetch = 0 : i64, scratch_operands = 0 : i64, tpu.core_type = #tpu.core_type<tc>, window_params = [{transform_indices = @transform_0, window_bounds = array<i64: 1, 32, 16>}, {transform_indices = @transform_1, window_bounds = array<i64: 1, 32, 16>}, {pipeline_mode = #tpu.pipeline_mode<synchronous>, transform_indices = @transform_2, window_bounds = array<i64: 64, 192>}, {pipeline_mode = #tpu.pipeline_mode<synchronous>, transform_indices = @transform_3, window_bounds = array<i64: 64, 1>}, {pipeline_mode = #tpu.pipeline_mode<synchronous>, transform_indices = @transform_4, window_bounds = array<i64: 64, 192>}, {pipeline_mode = #tpu.pipeline_mode<synchronous>, transform_indices = @transform_5, window_bounds = array<i64: 64, 1>}, {transform_indices = @transform_6, window_bounds = array<i64: 1, 32, 16>}, {transform_indices = @transform_7, window_bounds = array<i64: 1, 32, 16>}]} {
    %c0 = arith.constant 0 : index
    %c0_0 = arith.constant 0 : index
    %c0_1 = arith.constant 0 : index
    %0 = vector.load %arg1[%c0, %c0_0, %c0_1] : memref<1x32x16xf32, #tpu.memory_space<vmem>>, vector<1x32x16xf32>
    %1 = vector.shape_cast %0 : vector<1x32x16xf32> to vector<32x16xf32>
    %c0_2 = arith.constant 0 : index
    %c0_3 = arith.constant 0 : index
    %c0_4 = arith.constant 0 : index
    %2 = vector.load %arg2[%c0_2, %c0_3, %c0_4] : memref<1x32x16xf32, #tpu.memory_space<vmem>>, vector<1x32x16xf32>
    %3 = vector.shape_cast %2 : vector<1x32x16xf32> to vector<32x16xf32>
    %4 = tpu.concatenate %1, %3 in 0 : vector<32x16xf32>, vector<32x16xf32> -> vector<64x16xf32>
    %cst = arith.constant 0.000000e+00 : f32
    %5 = vector.broadcast %cst : f32 to vector<64x1xf32>
    %6 = tpu.concatenate %5, %4, %5 in 1 : vector<64x1xf32>, vector<64x16xf32>, vector<64x1xf32> -> vector<64x18xf32>
    %7 = vector.extract_strided_slice %6 {offsets = [0, 0], sizes = [64, 16], strides = [1, 1]} : vector<64x18xf32> to vector<64x16xf32>
    %8 = vector.extract_strided_slice %6 {offsets = [0, 1], sizes = [64, 16], strides = [1, 1]} : vector<64x18xf32> to vector<64x16xf32>
    %9 = vector.extract_strided_slice %6 {offsets = [0, 2], sizes = [64, 16], strides = [1, 1]} : vector<64x18xf32> to vector<64x16xf32>
    %10 = tpu.concatenate %7, %8, %9 in 0 : vector<64x16xf32>, vector<64x16xf32>, vector<64x16xf32> -> vector<192x16xf32>
    %c0_5 = arith.constant 0 : index
    %c0_6 = arith.constant 0 : index
    %11 = vector.load %arg3[%c0_5, %c0_6] : memref<64x192xf32, #tpu.memory_space<vmem>>, vector<64x192xf32>
    %cst_7 = arith.constant dense<0.000000e+00> : vector<64x16xf32>
    %12 = tpu.matmul %11, %10, %cst_7 {dimension_numbers = #tpu.dot_dimension_numbers<[1], [0], [0], [1], [0, 0, 1, 1], [], []>} : vector<64x192xf32>, vector<192x16xf32>, vector<64x16xf32> -> vector<64x16xf32>
    %c0_8 = arith.constant 0 : index
    %c0_9 = arith.constant 0 : index
    %13 = vector.load %arg4[%c0_8, %c0_9] : memref<64x1xf32, #tpu.memory_space<vmem>>, vector<64x1xf32>
    %14 = vector.broadcast %13 : vector<64x1xf32> to vector<64x16xf32>
    %15 = arith.addf %12, %14 : vector<64x16xf32>
    %cst_10 = arith.constant 0.000000e+00 : f32
    %16 = vector.broadcast %cst_10 : f32 to vector<64x16xf32>
    %17 = arith.maximumf %15, %16 : vector<64x16xf32>
    %cst_11 = arith.constant 0.000000e+00 : f32
    %18 = vector.broadcast %cst_11 : f32 to vector<64x1xf32>
    %19 = tpu.concatenate %18, %17, %18 in 1 : vector<64x1xf32>, vector<64x16xf32>, vector<64x1xf32> -> vector<64x18xf32>
    %20 = vector.extract_strided_slice %19 {offsets = [0, 0], sizes = [64, 16], strides = [1, 1]} : vector<64x18xf32> to vector<64x16xf32>
    %21 = vector.extract_strided_slice %19 {offsets = [0, 1], sizes = [64, 16], strides = [1, 1]} : vector<64x18xf32> to vector<64x16xf32>
    %22 = vector.extract_strided_slice %19 {offsets = [0, 2], sizes = [64, 16], strides = [1, 1]} : vector<64x18xf32> to vector<64x16xf32>
    %23 = tpu.concatenate %20, %21, %22 in 0 : vector<64x16xf32>, vector<64x16xf32>, vector<64x16xf32> -> vector<192x16xf32>
    %c0_12 = arith.constant 0 : index
    %c0_13 = arith.constant 0 : index
    %24 = vector.load %arg5[%c0_12, %c0_13] : memref<64x192xf32, #tpu.memory_space<vmem>>, vector<64x192xf32>
    %cst_14 = arith.constant dense<0.000000e+00> : vector<64x16xf32>
    %25 = tpu.matmul %24, %23, %cst_14 {dimension_numbers = #tpu.dot_dimension_numbers<[1], [0], [0], [1], [0, 0, 1, 1], [], []>} : vector<64x192xf32>, vector<192x16xf32>, vector<64x16xf32> -> vector<64x16xf32>
    %c0_15 = arith.constant 0 : index
    %c0_16 = arith.constant 0 : index
    %26 = vector.load %arg6[%c0_15, %c0_16] : memref<64x1xf32, #tpu.memory_space<vmem>>, vector<64x1xf32>
    %27 = vector.broadcast %26 : vector<64x1xf32> to vector<64x16xf32>
    %28 = arith.addf %25, %27 : vector<64x16xf32>
    %29 = vector.extract_strided_slice %28 {offsets = [0, 0], sizes = [32, 16], strides = [1, 1]} : vector<64x16xf32> to vector<32x16xf32>
    %c0_17 = arith.constant 0 : index
    %c0_18 = arith.constant 0 : index
    %c0_19 = arith.constant 0 : index
    %30 = vector.load %arg7[%c0_17, %c0_18, %c0_19] : memref<1x32x16xf32, #tpu.memory_space<vmem>>, vector<1x32x16xf32>
    %31 = vector.shape_cast %30 : vector<1x32x16xf32> to vector<32x16xf32>
    %32 = vector.shape_cast %29 : vector<32x16xf32> to vector<1x32x16xf32>
    tpu.vector_store %arg7[%c0_17, %c0_18, %c0_19], %32 {strides = array<i32>} : memref<1x32x16xf32, #tpu.memory_space<vmem>>, vector<1x32x16xf32>,
    %33 = vector.extract_strided_slice %28 {offsets = [32, 0], sizes = [32, 16], strides = [1, 1]} : vector<64x16xf32> to vector<32x16xf32>
    %c0_20 = arith.constant 0 : index
    %c0_21 = arith.constant 0 : index
    %c0_22 = arith.constant 0 : index
    %34 = vector.load %arg8[%c0_20, %c0_21, %c0_22] : memref<1x32x16xf32, #tpu.memory_space<vmem>>, vector<1x32x16xf32>
    %35 = vector.shape_cast %34 : vector<1x32x16xf32> to vector<32x16xf32>
    %36 = vector.shape_cast %33 : vector<32x16xf32> to vector<1x32x16xf32>
    tpu.vector_store %arg8[%c0_20, %c0_21, %c0_22], %36 {strides = array<i32>} : memref<1x32x16xf32, #tpu.memory_space<vmem>>, vector<1x32x16xf32>,
    return
  }
  func.func @transform_0(%arg0: i32) -> (i32, i32, i32) {
    %c0_i32 = arith.constant 0 : i32
    %c0_i32_0 = arith.constant 0 : i32
    %c0_i32_1 = arith.constant 0 : i32
    return %arg0, %c0_i32, %c0_i32_0 : i32, i32, i32
  }
  func.func @transform_1(%arg0: i32) -> (i32, i32, i32) {
    %c0_i32 = arith.constant 0 : i32
    %c0_i32_0 = arith.constant 0 : i32
    %c0_i32_1 = arith.constant 0 : i32
    return %arg0, %c0_i32, %c0_i32_0 : i32, i32, i32
  }
  func.func @transform_2(%arg0: i32) -> (i32, i32) {
    %c0_i32 = arith.constant 0 : i32
    %c0_i32_0 = arith.constant 0 : i32
    %c0_i32_1 = arith.constant 0 : i32
    return %c0_i32, %c0_i32_0 : i32, i32
  }
  func.func @transform_3(%arg0: i32) -> (i32, i32) {
    %c0_i32 = arith.constant 0 : i32
    %c0_i32_0 = arith.constant 0 : i32
    %c0_i32_1 = arith.constant 0 : i32
    return %c0_i32, %c0_i32_0 : i32, i32
  }
  func.func @transform_4(%arg0: i32) -> (i32, i32) {
    %c0_i32 = arith.constant 0 : i32
    %c0_i32_0 = arith.constant 0 : i32
    %c0_i32_1 = arith.constant 0 : i32
    return %c0_i32, %c0_i32_0 : i32, i32
  }
  func.func @transform_5(%arg0: i32) -> (i32, i32) {
    %c0_i32 = arith.constant 0 : i32
    %c0_i32_0 = arith.constant 0 : i32
    %c0_i32_1 = arith.constant 0 : i32
    return %c0_i32, %c0_i32_0 : i32, i32
  }
  func.func @transform_6(%arg0: i32) -> (i32, i32, i32) {
    %c0_i32 = arith.constant 0 : i32
    %c0_i32_0 = arith.constant 0 : i32
    %c0_i32_1 = arith.constant 0 : i32
    return %arg0, %c0_i32, %c0_i32_0 : i32, i32, i32
  }
  func.func @transform_7(%arg0: i32) -> (i32, i32, i32) {
    %c0_i32 = arith.constant 0 : i32
    %c0_i32_0 = arith.constant 0 : i32
    %c0_i32_1 = arith.constant 0 : i32
    return %arg0, %c0_i32, %c0_i32_0 : i32, i32, i32
  }
}

</mosaic_0001>

<llo_original>
// kernel: tpu_custom_call.1
$region0: #{tpu_custom_call.1}
  #allocation0 [shape = 'u32[]', space=smem, size = 0x4, offset = 0x4, fixed_abs, tag = 'smem constant byte address 0x4 - core index']
  #allocation1 [shape = 'u32[72,128]{1,0:T(1,128)}', space=vmem, size = 0x9000, scoped, tag = 'internal scratch']
  %s0 = inlined_call_operand.vmem [shape: f32[2,32,16], index: 0, kind: input, shape index: {}]
  %s1 = inlined_call_operand.vmem [shape: f32[2,32,16], index: 1, kind: input, shape index: {}]
  %s2 = inlined_call_operand.vmem [shape: f32[64,192], index: 2, kind: input, shape index: {}]
  %s3 = inlined_call_operand.vmem [shape: f32[64,1], index: 3, kind: input, shape index: {}]
  %s4 = inlined_call_operand.hbm [shape: f32[64,192], index: 4, kind: input, shape index: {}]
  %s5 = inlined_call_operand.vmem [shape: f32[64,1], index: 5, kind: input, shape index: {}]
  %s6 = inlined_call_operand.vmem [shape: f32[2,32,16], index: 6, kind: output, shape index: {0}]
  %s7 = inlined_call_operand.vmem [shape: f32[2,32,16], index: 7, kind: output, shape index: {1}]
  %8 = xla_tuple %s6, %s7
  %s9 = sld [smem:[#allocation0]]
  $region69: #{tpu_custom_call.1} parent=0
    _
  %s11 = ssub.s32 1, %s9
  %s12 = scalar_select 0, %s11, %s9
  $region1: #{tpu_custom_call.1} parent=0
    #allocation2 [shape = 'u8[65536]{0}', space=vmem, size = 0x10000, scoped, tag = 'input window, operand 4, single buffered']
    #allocation3 [shape = 's32[2]{0}', space=sflag, size = 0x8, scoped, tag = 'scoped memory for tpu_custom_call.1']
    %13 = vsyncpa [#allocation3], 0
    loop: start=0, step=1, limit=4
    $region2: #{tpu_custom_call.1} parent=1 // loop_pre_header
      _
    $region3: #{tpu_custom_call.1} parent=1 // loop_header
      %s15 = sphi 0, %s19
      %p16 = scmp.ge.s32.totalorder %s15, 4
      %s25 = sphi 0, %s27
      %s28 = sphi 0, %s25
      %s29 = sphi 0, %s28
      %s45 = sphi 0, %s29
      %s51 = sphi 0, %s53
      %s54 = sphi 0, %s51
      %s55 = sphi 0, %s54
      %s71 = sphi 0, %s55
      %s75 = sphi 0, %s75
      %s77 = sphi 0, %s75
      %s78 = sphi 0, %s77
      %s92 = sphi 0, %s78
      %s96 = sphi 0, %s96
      %s98 = sphi 0, %s96
      %s99 = sphi 0, %s98
      %s113 = sphi 0, %s99
      %s117 = sphi 0, %s117
      %s119 = sphi 0, %s117
      %s120 = sphi 0, %s119
      %s134 = sphi 0, %s120
      %s138 = sphi 0, %s138
      %s140 = sphi 0, %s138
      %s141 = sphi 0, %s140
      %s155 = sphi 0, %s141
      %s161 = sphi 0, %s163
      %s164 = sphi 0, %s161
      %s165 = sphi 0, %s164
      %s181 = sphi 0, %s165
      %s187 = sphi 0, %s189
      %s190 = sphi 0, %s187
      %s191 = sphi 0, %s190
      %s207 = sphi 0, %s191
    $region4: #{tpu_custom_call.1} parent=1 // loop_header_branch
      %18 = sbr.rel (%p16) target = $region8
    $region5: #{tpu_custom_call.1} parent=1 // loop_body
      %s20 = ssub.s32 %s15, 1
      %s21 = ssub.s32 %s15, 2
      %s22 = sadd.s32 %s15, 1
      %s23 = ssub.s32 %s15, %s22
      %p24 = scmp.eq.s32.totalorder %s23, 0
      %s26 = sadd.s32 %s25, 1
      %s27 = scalar_select %p24, %s25, %s26
      %p30 = pneg %p24
      %p31 = scmp.eq.s32.totalorder %s15, 1
      %p32 = por %p30, %p31
      %p33 = scmp.ne.s32.totalorder %s25, %s28
      %p34 = scmp.eq.s32.totalorder %s15, 0
      %p35 = por %p33, %p34
      %p36 = scmp.ne.s32.totalorder %s25, %s28
      %p37 = scmp.eq.s32.totalorder %s20, 1
      %p38 = por %p36, %p37
      %p39 = scmp.ne.s32.totalorder %s28, %s29
      %p40 = scmp.eq.s32.totalorder %s20, 0
      %p41 = por %p39, %p40
      %p42 = scmp.ne.s32.totalorder %s28, %s29
      %p43 = scmp.eq.s32.totalorder %s21, 1
      %p44 = por %p42, %p43
      %p46 = scmp.ne.s32.totalorder %s29, %s45
      %p47 = scmp.eq.s32.totalorder %s21, 0
      %p48 = por %p46, %p47
      %s49 = ssub.s32 %s15, %s22
      %p50 = scmp.eq.s32.totalorder %s49, 0
      %s52 = sadd.s32 %s51, 1
      %s53 = scalar_select %p50, %s51, %s52
      %p56 = pneg %p50
      %p57 = scmp.eq.s32.totalorder %s15, 1
      %p58 = por %p56, %p57
      %p59 = scmp.ne.s32.totalorder %s51, %s54
      %p60 = scmp.eq.s32.totalorder %s15, 0
      %p61 = por %p59, %p60
      %p62 = scmp.ne.s32.totalorder %s51, %s54
      %p63 = scmp.eq.s32.totalorder %s20, 1
      %p64 = por %p62, %p63
      %p65 = scmp.ne.s32.totalorder %s54, %s55
      %p66 = scmp.eq.s32.totalorder %s20, 0
      %p67 = por %p65, %p66
      %p68 = scmp.ne.s32.totalorder %s54, %s55
      %p69 = scmp.eq.s32.totalorder %s21, 1
      %p70 = por %p68, %p69
      %p72 = scmp.ne.s32.totalorder %s55, %s71
      %p73 = scmp.eq.s32.totalorder %s21, 0
      %p74 = por %p72, %p73
      %s76 = sadd.s32 %s75, 1
      %p79 = scmp.eq.s32.totalorder %s15, 1
      %p80 = scmp.ne.s32.totalorder %s75, %s77
      %p81 = scmp.eq.s32.totalorder %s15, 0
      %p82 = por %p80, %p81
      %p83 = scmp.ne.s32.totalorder %s75, %s77
      %p84 = scmp.eq.s32.totalorder %s20, 1
      %p85 = por %p83, %p84
      %p86 = scmp.ne.s32.totalorder %s77, %s78
      %p87 = scmp.eq.s32.totalorder %s20, 0
      %p88 = por %p86, %p87
      %p89 = scmp.ne.s32.totalorder %s77, %s78
      %p90 = scmp.eq.s32.totalorder %s21, 1
      %p91 = por %p89, %p90
      %p93 = scmp.ne.s32.totalorder %s78, %s92
      %p94 = scmp.eq.s32.totalorder %s21, 0
      %p95 = por %p93, %p94
      %s97 = sadd.s32 %s96, 1
      %p100 = scmp.eq.s32.totalorder %s15, 1
      %p101 = scmp.ne.s32.totalorder %s96, %s98
      %p102 = scmp.eq.s32.totalorder %s15, 0
      %p103 = por %p101, %p102
      %p104 = scmp.ne.s32.totalorder %s96, %s98
      %p105 = scmp.eq.s32.totalorder %s20, 1
      %p106 = por %p104, %p105
      %p107 = scmp.ne.s32.totalorder %s98, %s99
      %p108 = scmp.eq.s32.totalorder %s20, 0
      %p109 = por %p107, %p108
      %p110 = scmp.ne.s32.totalorder %s98, %s99
      %p111 = scmp.eq.s32.totalorder %s21, 1
      %p112 = por %p110, %p111
      %p114 = scmp.ne.s32.totalorder %s99, %s113
      %p115 = scmp.eq.s32.totalorder %s21, 0
      %p116 = por %p114, %p115
      %s118 = sadd.s32 %s117, 1
      %p121 = scmp.eq.s32.totalorder %s15, 1
      %p122 = scmp.ne.s32.totalorder %s117, %s119
      %p123 = scmp.eq.s32.totalorder %s15, 0
      %p124 = por %p122, %p123
      %p125 = scmp.ne.s32.totalorder %s117, %s119
      %p126 = scmp.eq.s32.totalorder %s20, 1
      %p127 = por %p125, %p126
      %p128 = scmp.ne.s32.totalorder %s119, %s120
      %p129 = scmp.eq.s32.totalorder %s20, 0
      %p130 = por %p128, %p129
      %p131 = scmp.ne.s32.totalorder %s119, %s120
      %p132 = scmp.eq.s32.totalorder %s21, 1
      %p133 = por %p131, %p132
      %p135 = scmp.ne.s32.totalorder %s120, %s134
      %p136 = scmp.eq.s32.totalorder %s21, 0
      %p137 = por %p135, %p136
      %s139 = sadd.s32 %s138, 1
      %p142 = scmp.eq.s32.totalorder %s15, 1
      %p143 = scmp.ne.s32.totalorder %s138, %s140
      %p144 = scmp.eq.s32.totalorder %s15, 0
      %p145 = por %p143, %p144
      %p146 = scmp.ne.s32.totalorder %s138, %s140
      %p147 = scmp.eq.s32.totalorder %s20, 1
      %p148 = por %p146, %p147
      %p149 = scmp.ne.s32.totalorder %s140, %s141
      %p150 = scmp.eq.s32.totalorder %s20, 0
      %p151 = por %p149, %p150
      %p152 = scmp.ne.s32.totalorder %s140, %s141
      %p153 = scmp.eq.s32.totalorder %s21, 1
      %p154 = por %p152, %p153
      %p156 = scmp.ne.s32.totalorder %s141, %s155
      %p157 = scmp.eq.s32.totalorder %s21, 0
      %p158 = por %p156, %p157
      %s159 = ssub.s32 %s15, %s22
      %p160 = scmp.eq.s32.totalorder %s159, 0
      %s162 = sadd.s32 %s161, 1
      %s163 = scalar_select %p160, %s161, %s162
      %p166 = pneg %p160
      %p167 = scmp.eq.s32.totalorder %s15, 1
      %p168 = por %p166, %p167
      %p169 = scmp.ne.s32.totalorder %s161, %s164
      %p170 = scmp.eq.s32.totalorder %s15, 0
      %p171 = por %p169, %p170
      %p172 = scmp.ne.s32.totalorder %s161, %s164
      %p173 = scmp.eq.s32.totalorder %s20, 1
      %p174 = por %p172, %p173
      %p175 = scmp.ne.s32.totalorder %s164, %s165
      %p176 = scmp.eq.s32.totalorder %s20, 0
      %p177 = por %p175, %p176
      %p178 = scmp.ne.s32.totalorder %s164, %s165
      %p179 = scmp.eq.s32.totalorder %s21, 1
      %p180 = por %p178, %p179
      %p182 = scmp.ne.s32.totalorder %s165, %s181
      %p183 = scmp.eq.s32.totalorder %s21, 0
      %p184 = por %p182, %p183
      %s185 = ssub.s32 %s15, %s22
      %p186 = scmp.eq.s32.totalorder %s185, 0
      %s188 = sadd.s32 %s187, 1
      %s189 = scalar_select %p186, %s187, %s188
      %p192 = pneg %p186
      %p193 = scmp.eq.s32.totalorder %s15, 1
      %p194 = por %p192, %p193
      %p195 = scmp.ne.s32.totalorder %s187, %s190
      %p196 = scmp.eq.s32.totalorder %s15, 0
      %p197 = por %p195, %p196
      %p198 = scmp.ne.s32.totalorder %s187, %s190
      %p199 = scmp.eq.s32.totalorder %s20, 1
      %p200 = por %p198, %p199
      %p201 = scmp.ne.s32.totalorder %s190, %s191
      %p202 = scmp.eq.s32.totalorder %s20, 0
      %p203 = por %p201, %p202
      %p204 = scmp.ne.s32.totalorder %s190, %s191
      %p205 = scmp.eq.s32.totalorder %s21, 1
      %p206 = por %p204, %p205
      %p208 = scmp.ne.s32.totalorder %s191, %s207
      %p209 = scmp.eq.s32.totalorder %s21, 0
      %p210 = por %p208, %p209
      %p211 = scmp.le.s32.totalorder 1, %s15
      %p212 = scmp.lt.s32.totalorder %s15, 3
      %p213 = pnand %p211, %p212
      %p214 = pneg %p213
      // Predicated region
      $region9: #{tpu_custom_call.1} parent=5 // pred_check
        _
      $region10: #{tpu_custom_call.1} parent=5 // pred_check_branch
        %216 = sbr.rel (%p213) target = $region12
      $region11: #{tpu_custom_call.1} parent=5 // pred_region
        %s217 = ssub.s32 %s15, 1
        // Predicated region
        $region13: #{tpu_custom_call.1} parent=11 // pred_check
          %p218 = pneg %p88
        $region14: #{tpu_custom_call.1} parent=11 // pred_check_branch
          %220 = sbr.rel (%p218) target = $region16
        $region15: #{tpu_custom_call.1} parent=11 // pred_region
          _
        $region16: #{tpu_custom_call.1} parent=11 // pred_fallthru
          _
        // Predicated region
        $region17: #{tpu_custom_call.1} parent=11 // pred_check
          %p221 = pneg %p109
        $region18: #{tpu_custom_call.1} parent=11 // pred_check_branch
          %223 = sbr.rel (%p221) target = $region20
        $region19: #{tpu_custom_call.1} parent=11 // pred_region
          _
        $region20: #{tpu_custom_call.1} parent=11 // pred_fallthru
          _
        // Predicated region
        $region21: #{tpu_custom_call.1} parent=11 // pred_check
          %p224 = pneg %p130
        $region22: #{tpu_custom_call.1} parent=11 // pred_check_branch
          %226 = sbr.rel (%p224) target = $region24
        $region23: #{tpu_custom_call.1} parent=11 // pred_region
          %228 = vsyncadd [#allocation3], 0
          %s229 = sshll.u32 %s4, 4
          %s230 = int_to_ptr.hbm [resolvable:$true] %s229
          %s231 = sshll.u32 [#allocation2], 4
          %s232 = int_to_ptr.vmem [resolvable:$true] %s231
          %237 = dma.hbm_to_vmem [thread:$0]  %s230, 2048, %s232, [#allocation3], 256, 256, 16
        $region24: #{tpu_custom_call.1} parent=11 // pred_fallthru
          _
        // Predicated region
        $region25: #{tpu_custom_call.1} parent=11 // pred_check
          %p238 = pneg %p151
        $region26: #{tpu_custom_call.1} parent=11 // pred_check_branch
          %240 = sbr.rel (%p238) target = $region28
        $region27: #{tpu_custom_call.1} parent=11 // pred_region
          _
        $region28: #{tpu_custom_call.1} parent=11 // pred_fallthru
          _
      $region12: #{tpu_custom_call.1} parent=5 // pred_fallthru
        _
      %p241 = scmp.lt.s32.totalorder %s15, 2
      // Predicated region
      $region29: #{tpu_custom_call.1} parent=5 // pred_check
        %p242 = pneg %p241
      $region30: #{tpu_custom_call.1} parent=5 // pred_check_branch
        %244 = sbr.rel (%p242) target = $region32
      $region31: #{tpu_custom_call.1} parent=5 // pred_region
        // Predicated region
        $region33: #{tpu_custom_call.1} parent=31 // pred_check
          %p245 = pneg %p35
        $region34: #{tpu_custom_call.1} parent=31 // pred_check_branch
          %247 = sbr.rel (%p245) target = $region36
        $region35: #{tpu_custom_call.1} parent=31 // pred_region
          %p248 = scmp.lt.s32.totalorder %s15, 1
          %s249 = scalar_select %p248, %s15, 1
          %s250 = smul.addr %s249, 4
          %s251 = smul.addr %s250, 8
          %s252 = scalar_lea.vmem %s0, %s251
        $region36: #{tpu_custom_call.1} parent=31 // pred_fallthru
          _
        // Predicated region
        $region37: #{tpu_custom_call.1} parent=31 // pred_check
          %p253 = pneg %p61
        $region38: #{tpu_custom_call.1} parent=31 // pred_check_branch
          %255 = sbr.rel (%p253) target = $region40
        $region39: #{tpu_custom_call.1} parent=31 // pred_region
          %p256 = scmp.lt.s32.totalorder %s15, 1
          %s257 = scalar_select %p256, %s15, 1
          %s258 = smul.addr %s257, 4
          %s259 = smul.addr %s258, 8
          %s260 = scalar_lea.vmem %s1, %s259
        $region40: #{tpu_custom_call.1} parent=31 // pred_fallthru
          _
      $region32: #{tpu_custom_call.1} parent=5 // pred_fallthru
        _
      %p261 = scmp.le.s32.totalorder 1, %s15
      %p262 = scmp.lt.s32.totalorder %s15, 3
      %p263 = pnand %p261, %p262
      %p264 = pneg %p263
      // Predicated region
      $region41: #{tpu_custom_call.1} parent=5 // pred_check
        _
      $region42: #{tpu_custom_call.1} parent=5 // pred_check_branch
        %266 = sbr.rel (%p263) target = $region44
      $region43: #{tpu_custom_call.1} parent=5 // pred_region
        %s267 = ssub.s32 %s15, 1
        // Predicated region
        $region45: #{tpu_custom_call.1} parent=43 // pred_check
          %p268 = pneg %p130
        $region46: #{tpu_custom_call.1} parent=43 // pred_check_branch
          %270 = sbr.rel (%p268) target = $region48
        $region47: #{tpu_custom_call.1} parent=43 // pred_region
          %272 = dma.done [#allocation3], 2048
        $region48: #{tpu_custom_call.1} parent=43 // pred_fallthru
          _
        %p273 = scmp.lt.s32.totalorder %s20, 1
        %s274 = scalar_select %p273, %s20, 1
        %s275 = smul.addr %s274, 4
        %s276 = smul.addr %s275, 8
        %s277 = scalar_lea.vmem %s0, %s276
        %p278 = pneg %p41
        %p279 = pneg %p38
        %p280 = scmp.lt.s32.totalorder %s20, 1
        %s281 = scalar_select %p280, %s20, 1
        %s282 = smul.addr %s281, 4
        %s283 = smul.addr %s282, 8
        %s284 = scalar_lea.vmem %s1, %s283
        %p285 = pneg %p67
        %p286 = pneg %p64
        %p287 = pneg %p88
        %p288 = pneg %p85
        %p289 = pneg %p109
        %p290 = pneg %p106
        %p291 = pneg %p130
        %p292 = pneg %p127
        %p293 = pneg %p151
        %p294 = pneg %p148
        %p295 = pneg %p177
        %p296 = pneg %p174
        %p297 = scmp.lt.s32.totalorder %s20, 1
        %s298 = scalar_select %p297, %s20, 1
        %s299 = smul.addr %s298, 4
        %s300 = smul.addr %s299, 8
        %s301 = scalar_lea.vmem %s6, %s300
        %p302 = pneg %p203
        %p303 = pneg %p200
        %p304 = scmp.lt.s32.totalorder %s20, 1
        %s305 = scalar_select %p304, %s20, 1
        %s306 = smul.addr %s305, 4
        %s307 = smul.addr %s306, 8
        %s308 = scalar_lea.vmem %s7, %s307
        %p309 = scmp.lt.s32.totalorder %s20, 1
        %s310 = scalar_select %p309, %s20, 1
        %s311 = smul.addr %s310, 4
        %s312 = smul.addr %s311, 8
        %s313 = scalar_lea.vmem %s0, %s312
        %p314 = scmp.lt.s32.totalorder %s20, 1
        %s315 = scalar_select %p314, %s20, 1
        %s316 = smul.addr %s315, 4
        %s317 = smul.addr %s316, 8
        %s318 = scalar_lea.vmem %s1, %s317
        %p319 = scmp.lt.s32.totalorder %s20, 1
        %s320 = scalar_select %p319, %s20, 1
        %s321 = smul.addr %s320, 4
        %s322 = smul.addr %s321, 8
        %s323 = scalar_lea.vmem %s6, %s322
        %p324 = scmp.lt.s32.totalorder %s20, 1
        %s325 = scalar_select %p324, %s20, 1
        %s326 = smul.addr %s325, 4
        %s327 = smul.addr %s326, 8
        %s328 = scalar_lea.vmem %s7, %s327
        %v329 = vld [vmem:[%s313] sm:$0xff]
        %v330 = vld [vmem:[%s313 + $0x8] sm:$0xff]
        %v331 = vld [vmem:[%s313 + $0x10] sm:$0xff]
        %v332 = vld [vmem:[%s313 + $0x18] sm:$0xff]
        %v333 = vld [vmem:[%s318] sm:$0xff]
        %v334 = vld [vmem:[%s318 + $0x8] sm:$0xff]
        %v335 = vld [vmem:[%s318 + $0x10] sm:$0xff]
        %v336 = vld [vmem:[%s318 + $0x18] sm:$0xff]
        %345 = vrot.lane.b32.xlu0 %v329, 1
        %v346 = vpop.permute.xlu0 %345
        %347 = vrot.lane.b32.xlu0 %v330, 1
        %v348 = vpop.permute.xlu0 %347
        %349 = vrot.lane.b32.xlu0 %v331, 1
        %v350 = vpop.permute.xlu0 %349
        %351 = vrot.lane.b32.xlu0 %v332, 1
        %v352 = vpop.permute.xlu0 %351
        %353 = vrot.lane.b32.xlu0 %v333, 1
        %v354 = vpop.permute.xlu0 %353
        %355 = vrot.lane.b32.xlu0 %v334, 1
        %v356 = vpop.permute.xlu0 %355
        %357 = vrot.lane.b32.xlu0 %v335, 1
        %v358 = vpop.permute.xlu0 %357
        %359 = vrot.lane.b32.xlu0 %v336, 1
        %v360 = vpop.permute.xlu0 %359
        %vm369 = vcmask 7168
        %v370 = vsel %vm369, 0.0, %v346
        %v371 = vsel %vm369, 0.0, %v348
        %v372 = vsel %vm369, 0.0, %v350
        %v373 = vsel %vm369, 0.0, %v352
        %v374 = vsel %vm369, 0.0, %v354
        %v375 = vsel %vm369, 0.0, %v356
        %v376 = vsel %vm369, 0.0, %v358
        %v377 = vsel %vm369, 0.0, %v360
        %vm378 = vcmask 138240
        %v379 = vsel %vm378, %v370, 0.0
        %v380 = vsel %vm378, %v371, 0.0
        %v381 = vsel %vm378, %v372, 0.0
        %v382 = vsel %vm378, %v373, 0.0
        %v383 = vsel %vm378, %v374, 0.0
        %v384 = vsel %vm378, %v375, 0.0
        %v385 = vsel %vm378, %v376, 0.0
        %v386 = vsel %vm378, %v377, 0.0
        %395 = vrot.lane.b32.xlu0 %v379, 127
        %v396 = vpop.permute.xlu0 %395
        %397 = vrot.lane.b32.xlu0 %v380, 127
        %v398 = vpop.permute.xlu0 %397
        %399 = vrot.lane.b32.xlu0 %v381, 127
        %v400 = vpop.permute.xlu0 %399
        %401 = vrot.lane.b32.xlu0 %v382, 127
        %v402 = vpop.permute.xlu0 %401
        %403 = vrot.lane.b32.xlu0 %v383, 127
        %v404 = vpop.permute.xlu0 %403
        %405 = vrot.lane.b32.xlu0 %v384, 127
        %v406 = vpop.permute.xlu0 %405
        %407 = vrot.lane.b32.xlu0 %v385, 127
        %v408 = vpop.permute.xlu0 %407
        %409 = vrot.lane.b32.xlu0 %v386, 127
        %v410 = vpop.permute.xlu0 %409
        %419 = vrot.lane.b32.xlu0 %v379, 126
        %v420 = vpop.permute.xlu0 %419
        %421 = vrot.lane.b32.xlu0 %v380, 126
        %v422 = vpop.permute.xlu0 %421
        %423 = vrot.lane.b32.xlu0 %v381, 126
        %v424 = vpop.permute.xlu0 %423
        %425 = vrot.lane.b32.xlu0 %v382, 126
        %v426 = vpop.permute.xlu0 %425
        %427 = vrot.lane.b32.xlu0 %v383, 126
        %v428 = vpop.permute.xlu0 %427
        %429 = vrot.lane.b32.xlu0 %v384, 126
        %v430 = vpop.permute.xlu0 %429
        %431 = vrot.lane.b32.xlu0 %v385, 126
        %v432 = vpop.permute.xlu0 %431
        %433 = vrot.lane.b32.xlu0 %v386, 126
        %v434 = vpop.permute.xlu0 %433
        %v443 = vld [vmem:[%s2] sm:$0xff]
        %v444 = vld [vmem:[%s2 + $0x8] sm:$0xff]
        %v445 = vld [vmem:[%s2 + $0x10] sm:$0xff]
        %v446 = vld [vmem:[%s2 + $0x18] sm:$0xff]
        %v447 = vld [vmem:[%s2 + $0x20] sm:$0xff]
        %v448 = vld [vmem:[%s2 + $0x28] sm:$0xff]
        %v449 = vld [vmem:[%s2 + $0x30] sm:$0xff]
        %v450 = vld [vmem:[%s2 + $0x38] sm:$0xff]
        %v451 = vld [vmem:[%s2 + $0x40] sm:$0xff]
        %v452 = vld [vmem:[%s2 + $0x48] sm:$0xff]
        %v453 = vld [vmem:[%s2 + $0x50] sm:$0xff]
        %v454 = vld [vmem:[%s2 + $0x58] sm:$0xff]
        %v455 = vld [vmem:[%s2 + $0x60] sm:$0xff]
        %v456 = vld [vmem:[%s2 + $0x68] sm:$0xff]
        %v457 = vld [vmem:[%s2 + $0x70] sm:$0xff]
        %v458 = vld [vmem:[%s2 + $0x78] sm:$0xff]
        %v459 = vld [vmem:[%s3] sm:$0xff]
        %v460 = vld [vmem:[%s3 + $0x8] sm:$0xff]
        %v461 = vld [vmem:[%s3 + $0x10] sm:$0xff]
        %v462 = vld [vmem:[%s3 + $0x18] sm:$0xff]
        %v463 = vld [vmem:[%s3 + $0x20] sm:$0xff]
        %v464 = vld [vmem:[%s3 + $0x28] sm:$0xff]
        %v465 = vld [vmem:[%s3 + $0x30] sm:$0xff]
        %v466 = vld [vmem:[%s3 + $0x38] sm:$0xff]
        %468 = vset.pattern.permute.xlu0 0
        %469 = vperm.xlu0 %468, %v459
        %v470 = vpop.permute.xlu0 %469
        %473 = vset.pattern.permute.xlu0 0
        %474 = vperm.xlu0 %473, %v460
        %v475 = vpop.permute.xlu0 %474
        %478 = vset.pattern.permute.xlu0 0
        %479 = vperm.xlu0 %478, %v461
        %v480 = vpop.permute.xlu0 %479
        %483 = vset.pattern.permute.xlu0 0
        %484 = vperm.xlu0 %483, %v462
        %v485 = vpop.permute.xlu0 %484
        %488 = vset.pattern.permute.xlu0 0
        %489 = vperm.xlu0 %488, %v463
        %v490 = vpop.permute.xlu0 %489
        %493 = vset.pattern.permute.xlu0 0
        %494 = vperm.xlu0 %493, %v464
        %v495 = vpop.permute.xlu0 %494
        %498 = vset.pattern.permute.xlu0 0
        %499 = vperm.xlu0 %498, %v465
        %v500 = vpop.permute.xlu0 %499
        %503 = vset.pattern.permute.xlu0 0
        %504 = vperm.xlu0 %503, %v466
        %v505 = vpop.permute.xlu0 %504
        %vm507 = vcmask 523264
        %v509 = vsel %vm507, %v444, 0
        %v512 = vsel %vm507, %v446, 0
        %v515 = vsel %vm507, %v448, 0
        %v518 = vsel %vm507, %v450, 0
        %v521 = vsel %vm507, %v452, 0
        %v524 = vsel %vm507, %v454, 0
        %v527 = vsel %vm507, %v456, 0
        %v530 = vsel %vm507, %v458, 0
        %532 = vmatpush.msra.mxu0 %v410
        %533 = vmatpush.msra.mxu0 %v408
        %534 = vmatpush.msra.mxu0 %v406
        %535 = vmatpush.msra.mxu0 %v404
        %536 = vmatpush.msra.mxu0 %v402
        %537 = vmatpush.msra.mxu0 %v400
        %538 = vmatpush.msra.mxu0 %v398
        %539 = vmatpush.msra.mxu0 %v396
        %540 = vmatpush.msra.mxu0 %v386
        %541 = vmatpush.msra.mxu0 %v385
        %542 = vmatpush.msra.mxu0 %v384
        %543 = vmatpush.msra.mxu0 %v383
        %544 = vmatpush.msra.mxu0 %v382
        %545 = vmatpush.msra.mxu0 %v381
        %546 = vmatpush.msra.mxu0 %v380
        %547 = vmatpush.msra.mxu0 %v379
        %548 = vmatmul.f32.gmra.mxu0 %v443
        %v549 = vpop.f32.mrf.mxu0
        %v550 = vadd.f32 %v470, %v549
        %551 = vmatmul.f32.gmra.mxu0 %v445
        %v552 = vpop.f32.mrf.mxu0
        %v553 = vadd.f32 %v475, %v552
        %554 = vmatmul.f32.gmra.mxu0 %v447
        %v555 = vpop.f32.mrf.mxu0
        %v556 = vadd.f32 %v480, %v555
        %557 = vmatmul.f32.gmra.mxu0 %v449
        %v558 = vpop.f32.mrf.mxu0
        %v559 = vadd.f32 %v485, %v558
        %560 = vmatmul.f32.gmra.mxu0 %v451
        %v561 = vpop.f32.mrf.mxu0
        %v562 = vadd.f32 %v490, %v561
        %563 = vmatmul.f32.gmra.mxu0 %v453
        %v564 = vpop.f32.mrf.mxu0
        %v565 = vadd.f32 %v495, %v564
        %566 = vmatmul.f32.gmra.mxu0 %v455
        %v567 = vpop.f32.mrf.mxu0
        %v568 = vadd.f32 %v500, %v567
        %569 = vmatmul.f32.gmra.mxu0 %v457
        %v570 = vpop.f32.mrf.mxu0
        %v571 = vadd.f32 %v505, %v570
        %572 = vdwg.mxu0
        %573 = vmatpush.msra.mxu0 0.0
        %574 = vmatpush.msra.mxu0 0.0
        %575 = vmatpush.msra.mxu0 0.0
        %576 = vmatpush.msra.mxu0 0.0
        %577 = vmatpush.msra.mxu0 0.0
        %578 = vmatpush.msra.mxu0 0.0
        %579 = vmatpush.msra.mxu0 0.0
        %580 = vmatpush.msra.mxu0 0.0
        %581 = vmatpush.msra.mxu0 %v434
        %582 = vmatpush.msra.mxu0 %v432
        %583 = vmatpush.msra.mxu0 %v430
        %584 = vmatpush.msra.mxu0 %v428
        %585 = vmatpush.msra.mxu0 %v426
        %586 = vmatpush.msra.mxu0 %v424
        %587 = vmatpush.msra.mxu0 %v422
        %588 = vmatpush.msra.mxu0 %v420
        %589 = vmatmul.f32.gmra.mxu0 %v509
        %v590 = vpop.f32.mrf.mxu0
        %v591 = vadd.f32 %v550, %v590
        %592 = vmatmul.f32.gmra.mxu0 %v512
        %v593 = vpop.f32.mrf.mxu0
        %v594 = vadd.f32 %v553, %v593
        %595 = vmatmul.f32.gmra.mxu0 %v515
        %v596 = vpop.f32.mrf.mxu0
        %v597 = vadd.f32 %v556, %v596
        %598 = vmatmul.f32.gmra.mxu0 %v518
        %v599 = vpop.f32.mrf.mxu0
        %v600 = vadd.f32 %v559, %v599
        %601 = vmatmul.f32.gmra.mxu0 %v521
        %v602 = vpop.f32.mrf.mxu0
        %v603 = vadd.f32 %v562, %v602
        %604 = vmatmul.f32.gmra.mxu0 %v524
        %v605 = vpop.f32.mrf.mxu0
        %v606 = vadd.f32 %v565, %v605
        %607 = vmatmul.f32.gmra.mxu0 %v527
        %v608 = vpop.f32.mrf.mxu0
        %v609 = vadd.f32 %v568, %v608
        %610 = vmatmul.f32.gmra.mxu0 %v530
        %v611 = vpop.f32.mrf.mxu0
        %v612 = vadd.f32 %v571, %v611
        %613 = vdwg.mxu0
        %v614 = vmax.f32 %v591, 0.0
        %v615 = vmax.f32 %v594, 0.0
        %v616 = vmax.f32 %v597, 0.0
        %v617 = vmax.f32 %v600, 0.0
        %v618 = vmax.f32 %v603, 0.0
        %v619 = vmax.f32 %v606, 0.0
        %v620 = vmax.f32 %v609, 0.0
        %v621 = vmax.f32 %v612, 0.0
        %630 = vrot.lane.b32.xlu0 %v614, 1
        %v631 = vpop.permute.xlu0 %630
        %632 = vrot.lane.b32.xlu0 %v615, 1
        %v633 = vpop.permute.xlu0 %632
        %634 = vrot.lane.b32.xlu0 %v616, 1
        %v635 = vpop.permute.xlu0 %634
        %636 = vrot.lane.b32.xlu0 %v617, 1
        %v637 = vpop.permute.xlu0 %636
        %638 = vrot.lane.b32.xlu0 %v618, 1
        %v639 = vpop.permute.xlu0 %638
        %640 = vrot.lane.b32.xlu0 %v619, 1
        %v641 = vpop.permute.xlu0 %640
        %642 = vrot.lane.b32.xlu0 %v620, 1
        %v643 = vpop.permute.xlu0 %642
        %644 = vrot.lane.b32.xlu0 %v621, 1
        %v645 = vpop.permute.xlu0 %644
        %v654 = vsel %vm369, 0.0, %v631
        %v655 = vsel %vm369, 0.0, %v633
        %v656 = vsel %vm369, 0.0, %v635
        %v657 = vsel %vm369, 0.0, %v637
        %v658 = vsel %vm369, 0.0, %v639
        %v659 = vsel %vm369, 0.0, %v641
        %v660 = vsel %vm369, 0.0, %v643
        %v661 = vsel %vm369, 0.0, %v645
        %v662 = vsel %vm378, %v654, 0.0
        %v663 = vsel %vm378, %v655, 0.0
        %v664 = vsel %vm378, %v656, 0.0
        %v665 = vsel %vm378, %v657, 0.0
        %v666 = vsel %vm378, %v658, 0.0
        %v667 = vsel %vm378, %v659, 0.0
        %v668 = vsel %vm378, %v660, 0.0
        %v669 = vsel %vm378, %v661, 0.0
        %678 = vrot.lane.b32.xlu0 %v662, 127
        %v679 = vpop.permute.xlu0 %678
        %680 = vrot.lane.b32.xlu0 %v663, 127
        %v681 = vpop.permute.xlu0 %680
        %682 = vrot.lane.b32.xlu0 %v664, 127
        %v683 = vpop.permute.xlu0 %682
        %684 = vrot.lane.b32.xlu0 %v665, 127
        %v685 = vpop.permute.xlu0 %684
        %686 = vrot.lane.b32.xlu0 %v666, 127
        %v687 = vpop.permute.xlu0 %686
        %688 = vrot.lane.b32.xlu0 %v667, 127
        %v689 = vpop.permute.xlu0 %688
        %690 = vrot.lane.b32.xlu0 %v668, 127
        %v691 = vpop.permute.xlu0 %690
        %692 = vrot.lane.b32.xlu0 %v669, 127
        %v693 = vpop.permute.xlu0 %692
        %702 = vrot.lane.b32.xlu0 %v662, 126
        %v703 = vpop.permute.xlu0 %702
        %704 = vrot.lane.b32.xlu0 %v663, 126
        %v705 = vpop.permute.xlu0 %704
        %706 = vrot.lane.b32.xlu0 %v664, 126
        %v707 = vpop.permute.xlu0 %706
        %708 = vrot.lane.b32.xlu0 %v665, 126
        %v709 = vpop.permute.xlu0 %708
        %710 = vrot.lane.b32.xlu0 %v666, 126
        %v711 = vpop.permute.xlu0 %710
        %712 = vrot.lane.b32.xlu0 %v667, 126
        %v713 = vpop.permute.xlu0 %712
        %714 = vrot.lane.b32.xlu0 %v668, 126
        %v715 = vpop.permute.xlu0 %714
        %716 = vrot.lane.b32.xlu0 %v669, 126
        %v717 = vpop.permute.xlu0 %716
        %v726 = vld [vmem:[#allocation2] sm:$0xff]
        %v727 = vld [vmem:[#allocation2 + $0x8] sm:$0xff]
        %v728 = vld [vmem:[#allocation2 + $0x10] sm:$0xff]
        %v729 = vld [vmem:[#allocation2 + $0x18] sm:$0xff]
        %v730 = vld [vmem:[#allocation2 + $0x20] sm:$0xff]
        %v731 = vld [vmem:[#allocation2 + $0x28] sm:$0xff]
        %v732 = vld [vmem:[#allocation2 + $0x30] sm:$0xff]
        %v733 = vld [vmem:[#allocation2 + $0x38] sm:$0xff]
        %v734 = vld [vmem:[#allocation2 + $0x40] sm:$0xff]
        %v735 = vld [vmem:[#allocation2 + $0x48] sm:$0xff]
        %v736 = vld [vmem:[#allocation2 + $0x50] sm:$0xff]
        %v737 = vld [vmem:[#allocation2 + $0x58] sm:$0xff]
        %v738 = vld [vmem:[#allocation2 + $0x60] sm:$0xff]
        %v739 = vld [vmem:[#allocation2 + $0x68] sm:$0xff]
        %v740 = vld [vmem:[#allocation2 + $0x70] sm:$0xff]
        %v741 = vld [vmem:[#allocation2 + $0x78] sm:$0xff]
        %v742 = vld [vmem:[%s5] sm:$0xff]
        %v743 = vld [vmem:[%s5 + $0x8] sm:$0xff]
        %v744 = vld [vmem:[%s5 + $0x10] sm:$0xff]
        %v745 = vld [vmem:[%s5 + $0x18] sm:$0xff]
        %v746 = vld [vmem:[%s5 + $0x20] sm:$0xff]
        %v747 = vld [vmem:[%s5 + $0x28] sm:$0xff]
        %v748 = vld [vmem:[%s5 + $0x30] sm:$0xff]
        %v749 = vld [vmem:[%s5 + $0x38] sm:$0xff]
        %751 = vset.pattern.permute.xlu0 0
        %752 = vperm.xlu0 %751, %v742
        %v753 = vpop.permute.xlu0 %752
        %756 = vset.pattern.permute.xlu0 0
        %757 = vperm.xlu0 %756, %v743
        %v758 = vpop.permute.xlu0 %757
        %761 = vset.pattern.permute.xlu0 0
        %762 = vperm.xlu0 %761, %v744
        %v763 = vpop.permute.xlu0 %762
        %766 = vset.pattern.permute.xlu0 0
        %767 = vperm.xlu0 %766, %v745
        %v768 = vpop.permute.xlu0 %767
        %771 = vset.pattern.permute.xlu0 0
        %772 = vperm.xlu0 %771, %v746
        %v773 = vpop.permute.xlu0 %772
        %776 = vset.pattern.permute.xlu0 0
        %777 = vperm.xlu0 %776, %v747
        %v778 = vpop.permute.xlu0 %777
        %781 = vset.pattern.permute.xlu0 0
        %782 = vperm.xlu0 %781, %v748
        %v783 = vpop.permute.xlu0 %782
        %786 = vset.pattern.permute.xlu0 0
        %787 = vperm.xlu0 %786, %v749
        %v788 = vpop.permute.xlu0 %787
        %v791 = vsel %vm507, %v727, 0
        %v794 = vsel %vm507, %v729, 0
        %v797 = vsel %vm507, %v731, 0
        %v800 = vsel %vm507, %v733, 0
        %v803 = vsel %vm507, %v735, 0
        %v806 = vsel %vm507, %v737, 0
        %v809 = vsel %vm507, %v739, 0
        %v812 = vsel %vm507, %v741, 0
        %814 = vmatpush.msra.mxu0 %v693
        %815 = vmatpush.msra.mxu0 %v691
        %816 = vmatpush.msra.mxu0 %v689
        %817 = vmatpush.msra.mxu0 %v687
        %818 = vmatpush.msra.mxu0 %v685
        %819 = vmatpush.msra.mxu0 %v683
        %820 = vmatpush.msra.mxu0 %v681
        %821 = vmatpush.msra.mxu0 %v679
        %822 = vmatpush.msra.mxu0 %v669
        %823 = vmatpush.msra.mxu0 %v668
        %824 = vmatpush.msra.mxu0 %v667
        %825 = vmatpush.msra.mxu0 %v666
        %826 = vmatpush.msra.mxu0 %v665
        %827 = vmatpush.msra.mxu0 %v664
        %828 = vmatpush.msra.mxu0 %v663
        %829 = vmatpush.msra.mxu0 %v662
        %830 = vmatmul.f32.gmra.mxu0 %v726
        %v831 = vpop.f32.mrf.mxu0
        %v832 = vadd.f32 %v753, %v831
        %833 = vmatmul.f32.gmra.mxu0 %v728
        %v834 = vpop.f32.mrf.mxu0
        %v835 = vadd.f32 %v758, %v834
        %836 = vmatmul.f32.gmra.mxu0 %v730
        %v837 = vpop.f32.mrf.mxu0
        %v838 = vadd.f32 %v763, %v837
        %839 = vmatmul.f32.gmra.mxu0 %v732
        %v840 = vpop.f32.mrf.mxu0
        %v841 = vadd.f32 %v768, %v840
        %842 = vmatmul.f32.gmra.mxu0 %v734
        %v843 = vpop.f32.mrf.mxu0
        %v844 = vadd.f32 %v773, %v843
        %845 = vmatmul.f32.gmra.mxu0 %v736
        %v846 = vpop.f32.mrf.mxu0
        %v847 = vadd.f32 %v778, %v846
        %848 = vmatmul.f32.gmra.mxu0 %v738
        %v849 = vpop.f32.mrf.mxu0
        %v850 = vadd.f32 %v783, %v849
        %851 = vmatmul.f32.gmra.mxu0 %v740
        %v852 = vpop.f32.mrf.mxu0
        %v853 = vadd.f32 %v788, %v852
        %854 = vdwg.mxu0
        %855 = vmatpush.msra.mxu0 0.0
        %856 = vmatpush.msra.mxu0 0.0
        %857 = vmatpush.msra.mxu0 0.0
        %858 = vmatpush.msra.mxu0 0.0
        %859 = vmatpush.msra.mxu0 0.0
        %860 = vmatpush.msra.mxu0 0.0
        %861 = vmatpush.msra.mxu0 0.0
        %862 = vmatpush.msra.mxu0 0.0
        %863 = vmatpush.msra.mxu0 %v717
        %864 = vmatpush.msra.mxu0 %v715
        %865 = vmatpush.msra.mxu0 %v713
        %866 = vmatpush.msra.mxu0 %v711
        %867 = vmatpush.msra.mxu0 %v709
        %868 = vmatpush.msra.mxu0 %v707
        %869 = vmatpush.msra.mxu0 %v705
        %870 = vmatpush.msra.mxu0 %v703
        %871 = vmatmul.f32.gmra.mxu0 %v791
        %v872 = vpop.f32.mrf.mxu0
        %v873 = vadd.f32 %v832, %v872
        %874 = vmatmul.f32.gmra.mxu0 %v794
        %v875 = vpop.f32.mrf.mxu0
        %v876 = vadd.f32 %v835, %v875
        %877 = vmatmul.f32.gmra.mxu0 %v797
        %v878 = vpop.f32.mrf.mxu0
        %v879 = vadd.f32 %v838, %v878
        %880 = vmatmul.f32.gmra.mxu0 %v800
        %v881 = vpop.f32.mrf.mxu0
        %v882 = vadd.f32 %v841, %v881
        %883 = vmatmul.f32.gmra.mxu0 %v803
        %v884 = vpop.f32.mrf.mxu0
        %v885 = vadd.f32 %v844, %v884
        %886 = vmatmul.f32.gmra.mxu0 %v806
        %v887 = vpop.f32.mrf.mxu0
        %v888 = vadd.f32 %v847, %v887
        %889 = vmatmul.f32.gmra.mxu0 %v809
        %v890 = vpop.f32.mrf.mxu0
        %v891 = vadd.f32 %v850, %v890
        %892 = vmatmul.f32.gmra.mxu0 %v812
        %v893 = vpop.f32.mrf.mxu0
        %v894 = vadd.f32 %v853, %v893
        %895 = vdwg.mxu0
        %vm896 = vcmask 130048
        %897 = vst.msk [vmem:[%s323] sm:$0xff] %vm896, %v873
        %898 = vst.msk [vmem:[%s323 + $0x8] sm:$0xff] %vm896, %v876
        %899 = vst.msk [vmem:[%s323 + $0x10] sm:$0xff] %vm896, %v879
        %900 = vst.msk [vmem:[%s323 + $0x18] sm:$0xff] %vm896, %v882
        %901 = vst.msk [vmem:[%s328] sm:$0xff] %vm896, %v885
        %902 = vst.msk [vmem:[%s328 + $0x8] sm:$0xff] %vm896, %v888
        %903 = vst.msk [vmem:[%s328 + $0x10] sm:$0xff] %vm896, %v891
        %904 = vst.msk [vmem:[%s328 + $0x18] sm:$0xff] %vm896, %v894
        %p905 = scmp.lt.s32.totalorder %s20, 1
        %s906 = scalar_select %p905, %s20, 1
        %s907 = smul.addr %s906, 4
        %s908 = smul.addr %s907, 8
        %s909 = scalar_lea.vmem %s6, %s908
        %p910 = scmp.lt.s32.totalorder %s20, 1
        %s911 = scalar_select %p910, %s20, 1
        %s912 = smul.addr %s911, 4
        %s913 = smul.addr %s912, 8
        %s914 = scalar_lea.vmem %s7, %s913
        // Predicated region
        $region49: #{tpu_custom_call.1} parent=43 // pred_check
          %p915 = pneg %p174
        $region50: #{tpu_custom_call.1} parent=43 // pred_check_branch
          %917 = sbr.rel (%p915) target = $region52
        $region51: #{tpu_custom_call.1} parent=43 // pred_region
          _
        $region52: #{tpu_custom_call.1} parent=43 // pred_fallthru
          _
        // Predicated region
        $region53: #{tpu_custom_call.1} parent=43 // pred_check
          %p918 = pneg %p200
        $region54: #{tpu_custom_call.1} parent=43 // pred_check_branch
          %920 = sbr.rel (%p918) target = $region56
        $region55: #{tpu_custom_call.1} parent=43 // pred_region
          _
        $region56: #{tpu_custom_call.1} parent=43 // pred_fallthru
          _
      $region44: #{tpu_custom_call.1} parent=5 // pred_fallthru
        _
      %p921 = scmp.le.s32.totalorder 2, %s15
      // Predicated region
      $region57: #{tpu_custom_call.1} parent=5 // pred_check
        %p922 = pneg %p921
      $region58: #{tpu_custom_call.1} parent=5 // pred_check_branch
        %924 = sbr.rel (%p922) target = $region60
      $region59: #{tpu_custom_call.1} parent=5 // pred_region
        %s925 = ssub.s32 %s15, 2
        // Predicated region
        $region61: #{tpu_custom_call.1} parent=59 // pred_check
          %p926 = pneg %p180
        $region62: #{tpu_custom_call.1} parent=59 // pred_check_branch
          %928 = sbr.rel (%p926) target = $region64
        $region63: #{tpu_custom_call.1} parent=59 // pred_region
          %p929 = scmp.lt.s32.totalorder %s21, 1
          %s930 = scalar_select %p929, %s21, 1
          %s931 = smul.addr %s930, 4
          %s932 = smul.addr %s931, 8
          %s933 = scalar_lea.vmem %s6, %s932
        $region64: #{tpu_custom_call.1} parent=59 // pred_fallthru
          _
        // Predicated region
        $region65: #{tpu_custom_call.1} parent=59 // pred_check
          %p934 = pneg %p206
        $region66: #{tpu_custom_call.1} parent=59 // pred_check_branch
          %936 = sbr.rel (%p934) target = $region68
        $region67: #{tpu_custom_call.1} parent=59 // pred_region
          %p937 = scmp.lt.s32.totalorder %s21, 1
          %s938 = scalar_select %p937, %s21, 1
          %s939 = smul.addr %s938, 4
          %s940 = smul.addr %s939, 8
          %s941 = scalar_lea.vmem %s7, %s940
        $region68: #{tpu_custom_call.1} parent=59 // pred_fallthru
          _
      $region60: #{tpu_custom_call.1} parent=5 // pred_fallthru
        _
    $region6: #{tpu_custom_call.1} parent=1 // loop_footer
      %s19 = sadd.s32 1, %s15
    $region7: #{tpu_custom_call.1} parent=1 // loop_footer_branch
      %14 = sbr.rel target = $region3
    $region8: #{tpu_custom_call.1} parent=1 // loop_exit
      _
    %942 = vsyncpa [#allocation3], 1
    %s943 = scalar_lea.sflag [#allocation3], 1
    %944 = vsyncpa %s943, 1

</llo_original>
